<compile_context>
chip_gen: v7x
topology: tpu7x:2x2x1
jax: 0.10.0
libtpu: 0.0.40
codegen_flags: <defaults>
</compile_context>

<pallas_src>
import math

import jax
import jax.numpy as jnp
from jax import lax
from jax.experimental import pallas as pl
from jax.experimental.pallas import tpu as pltpu

_INV_SQRT2 = 1.0 / math.sqrt(2.0)


def _round_up(x, m):
    return (x + m - 1) // m * m


# ----------------------------- Pallas kernel --------------------------------

def _mlp_channel_kernel(x_ref, w1_ref, b1_ref, w2_ref, b2_ref, o_ref):
    # x_ref : (C, TILE_L)      w1_ref: (mlp_dim, C)   b1_ref: (mlp_dim, 1)
    # w2_ref: (C, mlp_dim)     b2_ref: (C, 1)         o_ref : (C, TILE_L)
    x = x_ref[...]
    h = jnp.dot(w1_ref[...], x, preferred_element_type=jnp.float32) + b1_ref[...]
    # exact GELU (matches torch.nn.GELU() default): 0.5*x*(1 + erf(x/sqrt(2)))
    h = 0.5 * h * (1.0 + lax.erf(h * _INV_SQRT2))
    y = jnp.dot(w2_ref[...], h, preferred_element_type=jnp.float32) + b2_ref[...]
    o_ref[...] = y.astype(o_ref.dtype)


# ----------------------------- tile selection --------------------------------

def _choose_tile_l(L, C, mlp_dim, batch,
                   vmem_budget_bytes=16 * 1024 * 1024, min_grid_steps=4):
    """Largest power-of-two multiple-of-128 spatial tile that (a) fits the VMEM
    budget — counting double-buffered in/out tiles, the fc1 intermediate, and
    *double-buffered* weights/biases — and (b) keeps >= min_grid_steps grid
    steps so v7x's two TensorCores each get a pipelined stream of blocks."""
    l_pad = _round_up(L, 128)

    def vmem_need(t):
        return 4 * (
            2 * C * t                               # x tile, double buffered
            + 2 * C * t                             # out tile, double buffered
            + mlp_dim * t                           # fc1 intermediate
            + 2 * (2 * C * mlp_dim + mlp_dim + C)   # weights + biases, 2 buffers each
        )

    tile = 128
    while tile * 2 <= min(32768, l_pad) and vmem_need(tile * 2) <= vmem_budget_bytes:
        tile *= 2
    # keep enough grid steps for megacore + pipeline steady state, but never
    # shrink below 256 lanes per block.
    while tile > 256 and batch * ((L + tile - 1) // tile) < min_grid_steps:
        tile //= 2
    return tile


# ------------------------------- wrappers ------------------------------------

def prepare_params(params):
    """Reshape the (squeezed) Conv3d 1x1x1 weights/biases into the 2-D forms the
    kernel expects.  No padding anywhere: the token stream stays at its native
    channel count in HBM, and only the tiny weights are held in VMEM."""
    w1 = jnp.asarray(params['fc1_w'], jnp.float32)   # (mlp_dim, hidden)
    b1 = jnp.asarray(params['fc1_b'], jnp.float32)   # (mlp_dim,)
    w2 = jnp.asarray(params['fc2_w'], jnp.float32)   # (hidden, mlp_dim)
    b2 = jnp.asarray(params['fc2_b'], jnp.float32)   # (hidden,)
    return {'w1': w1, 'b1': b1.reshape(-1, 1), 'w2': w2, 'b2': b2.reshape(-1, 1)}


def mlp_channel_forward(prep, x):
    # x: (B, C, *spatial) float32, PyTorch channel-first Conv3d layout.
    B, C = x.shape[:2]
    spatial = x.shape[2:]
    L = math.prod(spatial)
    mlp_dim = prep['w1'].shape[0]

    # Contiguous reshape (B, C, D, H, W) -> (B, C, L): metadata-only, no HBM pass.
    x3 = x.reshape(B, C, L)

    tile_l = _choose_tile_l(L, C, mlp_dim, B)
    n_tiles = (L + tile_l - 1) // tile_l   # Pallas masks the partial last block
    # TODO(synk): optional bf16 activation streaming would halve HBM bytes; kept
    # f32 here for exact torch parity.

    out = pl.pallas_call(
        _mlp_channel_kernel,
        out_shape=jax.ShapeDtypeStruct((B, C, L), x.dtype),
        grid_spec=pltpu.PrefetchScalarGridSpec(
            num_scalar_prefetch=0,
            grid=(B, n_tiles),
            in_specs=[
                pl.BlockSpec((None, C, tile_l), lambda b, l: (b, 0, l)),   # x tile
                pl.BlockSpec((mlp_dim, C), lambda b, l: (0, 0)),           # W1 (resident)
                pl.BlockSpec((mlp_dim, 1), lambda b, l: (0, 0)),           # b1
                pl.BlockSpec((C, mlp_dim), lambda b, l: (0, 0)),           # W2 (resident)
                pl.BlockSpec((C, 1), lambda b, l: (0, 0)),                 # b2
            ],
            out_specs=pl.BlockSpec((None, C, tile_l), lambda b, l: (b, 0, l)),
        ),
        compiler_params=pltpu.CompilerParams(
            dimension_semantics=("parallel", "parallel"),
            vmem_limit_bytes=32 * 1024 * 1024,
        ),
    )(x3, prep['w1'], prep['b1'], prep['w2'], prep['b2'])

    return out.reshape(B, C, *spatial)


# --------------------------------- main --------------------------------------

if __name__ == "__main__":
    key = jax.random.PRNGKey(0)
    k_x, k_w1, k_b1, k_w2, k_b2 = jax.random.split(key, 5)

    hidden_size, mlp_dim = 8, 32            # MlpChannel(hidden_size=8, mlp_dim=32)
    B, Dd, Hh, Ww = 2, 8, 8, 8              # 5-D volume (B, C, d, h, w) -> 512 voxels/ex

    params = {
        'fc1_w': 0.2 * jax.random.normal(k_w1, (mlp_dim, hidden_size), jnp.float32),
        'fc1_b': 0.1 * jax.random.normal(k_b1, (mlp_dim,), jnp.float32),
        'fc2_w': 0.2 * jax.random.normal(k_w2, (hidden_size, mlp_dim), jnp.float32),
        'fc2_b': 0.1 * jax.random.normal(k_b2, (hidden_size,), jnp.float32),
    }
    x = jax.random.normal(k_x, (B, hidden_size, Dd, Hh, Ww), dtype=jnp.float32)

    prep = prepare_params(params)
    out = jax.block_until_ready(mlp_channel_forward(prep, x))

    # pure-JAX reference (Conv3d 1x1x1 == per-voxel channel matmul, exact GELU)
    x3 = x.reshape(B, hidden_size, -1)
    h = jnp.einsum('mc,bcl->bml', params['fc1_w'], x3) + params['fc1_b'][None, :, None]
    h = 0.5 * h * (1.0 + lax.erf(h / jnp.sqrt(2.0)))
    ref = jnp.einsum('cm,bml->bcl', params['fc2_w'], h) + params['fc2_b'][None, :, None]
    ref = ref.reshape(x.shape)

    assert out.shape == x.shape and out.dtype == jnp.float32
    assert bool(jnp.all(jnp.isfinite(out)))
    max_err = float(jnp.max(jnp.abs(out - ref)))
    assert max_err < 1e-3, f"max abs error {max_err}"
    print("KERNEL_OK")
</pallas_src>

<mosaic_0001>
module attributes {stable_mosaic.version = 11 : i64} {
  func.func @_mlp_channel_kernel(%arg0: i32, %arg1: i32, %arg2: memref<1x8x256xf32, #tpu.memory_space<vmem>>, %arg3: memref<32x8xf32, #tpu.memory_space<vmem>>, %arg4: memref<32x1xf32, #tpu.memory_space<vmem>>, %arg5: memref<8x32xf32, #tpu.memory_space<vmem>>, %arg6: memref<8x1xf32, #tpu.memory_space<vmem>>, %arg7: memref<1x8x256xf32, #tpu.memory_space<vmem>>) attributes {dimension_semantics = [#tpu.dimension_semantics<parallel>, #tpu.dimension_semantics<parallel>], iteration_bounds = array<i64: 2, 2>, scalar_prefetch = 0 : i64, scratch_operands = 0 : i64, tpu.core_type = #tpu.core_type<tc>, window_params = [{transform_indices = @transform_0, window_bounds = array<i64: 1, 8, 256>}, {pipeline_mode = #tpu.pipeline_mode<synchronous>, transform_indices = @transform_1, window_bounds = array<i64: 32, 8>}, {pipeline_mode = #tpu.pipeline_mode<synchronous>, transform_indices = @transform_2, window_bounds = array<i64: 32, 1>}, {pipeline_mode = #tpu.pipeline_mode<synchronous>, transform_indices = @transform_3, window_bounds = array<i64: 8, 32>}, {pipeline_mode = #tpu.pipeline_mode<synchronous>, transform_indices = @transform_4, window_bounds = array<i64: 8, 1>}, {transform_indices = @transform_5, window_bounds = array<i64: 1, 8, 256>}]} {
    %c0 = arith.constant 0 : index
    %c0_0 = arith.constant 0 : index
    %c0_1 = arith.constant 0 : index
    %0 = vector.load %arg2[%c0, %c0_0, %c0_1] : memref<1x8x256xf32, #tpu.memory_space<vmem>>, vector<1x8x256xf32>
    %1 = vector.shape_cast %0 : vector<1x8x256xf32> to vector<8x256xf32>
    %c0_2 = arith.constant 0 : index
    %c0_3 = arith.constant 0 : index
    %2 = vector.load %arg3[%c0_2, %c0_3] : memref<32x8xf32, #tpu.memory_space<vmem>>, vector<32x8xf32>
    %cst = arith.constant dense<0.000000e+00> : vector<32x256xf32>
    %3 = tpu.matmul %2, %1, %cst {dimension_numbers = #tpu.dot_dimension_numbers<[1], [0], [0], [1], [0, 0, 1, 1], [], []>} : vector<32x8xf32>, vector<8x256xf32>, vector<32x256xf32> -> vector<32x256xf32>
    %c0_4 = arith.constant 0 : index
    %c0_5 = arith.constant 0 : index
    %4 = vector.load %arg4[%c0_4, %c0_5] : memref<32x1xf32, #tpu.memory_space<vmem>>, vector<32x1xf32>
    %5 = vector.broadcast %4 : vector<32x1xf32> to vector<32x256xf32>
    %6 = arith.addf %3, %5 : vector<32x256xf32>
    %cst_6 = arith.constant 5.000000e-01 : f32
    %7 = vector.broadcast %cst_6 : f32 to vector<32x256xf32>
    %8 = arith.mulf %7, %6 : vector<32x256xf32>
    %cst_7 = arith.constant 0.707106769 : f32
    %9 = vector.broadcast %cst_7 : f32 to vector<32x256xf32>
    %10 = arith.mulf %6, %9 : vector<32x256xf32>
    %11 = math.erf %10 : vector<32x256xf32>
    %cst_8 = arith.constant 1.000000e+00 : f32
    %12 = vector.broadcast %cst_8 : f32 to vector<32x256xf32>
    %13 = arith.addf %12, %11 : vector<32x256xf32>
    %14 = arith.mulf %8, %13 : vector<32x256xf32>
    %c0_9 = arith.constant 0 : index
    %c0_10 = arith.constant 0 : index
    %15 = vector.load %arg5[%c0_9, %c0_10] : memref<8x32xf32, #tpu.memory_space<vmem>>, vector<8x32xf32>
    %cst_11 = arith.constant dense<0.000000e+00> : vector<8x256xf32>
    %16 = tpu.matmul %15, %14, %cst_11 {dimension_numbers = #tpu.dot_dimension_numbers<[1], [0], [0], [1], [0, 0, 1, 1], [], []>} : vector<8x32xf32>, vector<32x256xf32>, vector<8x256xf32> -> vector<8x256xf32>
    %c0_12 = arith.constant 0 : index
    %c0_13 = arith.constant 0 : index
    %17 = vector.load %arg6[%c0_12, %c0_13] : memref<8x1xf32, #tpu.memory_space<vmem>>, vector<8x1xf32>
    %18 = vector.broadcast %17 : vector<8x1xf32> to vector<8x256xf32>
    %19 = arith.addf %16, %18 : vector<8x256xf32>
    %c0_14 = arith.constant 0 : index
    %c0_15 = arith.constant 0 : index
    %c0_16 = arith.constant 0 : index
    %20 = vector.load %arg7[%c0_14, %c0_15, %c0_16] : memref<1x8x256xf32, #tpu.memory_space<vmem>>, vector<1x8x256xf32>
    %21 = vector.shape_cast %20 : vector<1x8x256xf32> to vector<8x256xf32>
    %22 = vector.shape_cast %19 : vector<8x256xf32> to vector<1x8x256xf32>
    tpu.vector_store %arg7[%c0_14, %c0_15, %c0_16], %22 {strides = array<i32>} : memref<1x8x256xf32, #tpu.memory_space<vmem>>, vector<1x8x256xf32>,
    return
  }
  func.func @transform_0(%arg0: i32, %arg1: i32) -> (i32, i32, i32) {
    %c0_i32 = arith.constant 0 : i32
    %c0_i32_0 = arith.constant 0 : i32
    return %arg0, %c0_i32, %arg1 : i32, i32, i32
  }
  func.func @transform_1(%arg0: i32, %arg1: i32) -> (i32, i32) {
    %c0_i32 = arith.constant 0 : i32
    %c0_i32_0 = arith.constant 0 : i32
    %c0_i32_1 = arith.constant 0 : i32
    return %c0_i32, %c0_i32_0 : i32, i32
  }
  func.func @transform_2(%arg0: i32, %arg1: i32) -> (i32, i32) {
    %c0_i32 = arith.constant 0 : i32
    %c0_i32_0 = arith.constant 0 : i32
    %c0_i32_1 = arith.constant 0 : i32
    return %c0_i32, %c0_i32_0 : i32, i32
  }
  func.func @transform_3(%arg0: i32, %arg1: i32) -> (i32, i32) {
    %c0_i32 = arith.constant 0 : i32
    %c0_i32_0 = arith.constant 0 : i32
    %c0_i32_1 = arith.constant 0 : i32
    return %c0_i32, %c0_i32_0 : i32, i32
  }
  func.func @transform_4(%arg0: i32, %arg1: i32) -> (i32, i32) {
    %c0_i32 = arith.constant 0 : i32
    %c0_i32_0 = arith.constant 0 : i32
    %c0_i32_1 = arith.constant 0 : i32
    return %c0_i32, %c0_i32_0 : i32, i32
  }
  func.func @transform_5(%arg0: i32, %arg1: i32) -> (i32, i32, i32) {
    %c0_i32 = arith.constant 0 : i32
    %c0_i32_0 = arith.constant 0 : i32
    return %arg0, %c0_i32, %arg1 : i32, i32, i32
  }
}

</mosaic_0001>

<llo_original>
// kernel: tpu_custom_call.1
$region0: #{tpu_custom_call.1}
  #allocation0 [shape = 'u32[]', space=smem, size = 0x4, offset = 0x4, fixed_abs, tag = 'smem constant byte address 0x4 - core index']
  #allocation1 [shape = 'u32[144,128]{1,0:T(1,128)}', space=vmem, size = 0x12000, scoped, tag = 'internal scratch']
  %s0 = inlined_call_operand.vmem [shape: f32[2,8,512], index: 0, kind: input, shape index: {}]
  %s1 = inlined_call_operand.vmem [shape: f32[32,8], index: 1, kind: input, shape index: {}]
  %s2 = inlined_call_operand.vmem [shape: f32[32,1], index: 2, kind: input, shape index: {}]
  %s3 = inlined_call_operand.vmem [shape: f32[8,32], index: 3, kind: input, shape index: {}]
  %s4 = inlined_call_operand.vmem [shape: f32[8,1], index: 4, kind: input, shape index: {}]
  %s5 = inlined_call_operand.hbm [shape: f32[2,8,512], index: 5, kind: output, shape index: {}]
  %s6 = sld [smem:[#allocation0]]
  $region53: #{tpu_custom_call.1} parent=0
    _
  %s8 = ssub.s32 1, %s6
  %s9 = scalar_select 0, %s8, %s6
  $region1: #{tpu_custom_call.1} parent=0
    #allocation2 [shape = 'u8[16384]{0}', space=vmem, size = 0x4000, scoped, tag = 'output window, operand 0']
    #allocation3 [shape = 's32[2]{0}', space=sflag, size = 0x8, scoped, tag = 'scoped memory for tpu_custom_call.1']
    %10 = vsyncpa [#allocation3], 0
    %s11 = scalar_lea.sflag [#allocation3], 1
    %12 = vsyncpa %s11, 0
    loop: start=0, step=1, limit=6
    $region2: #{tpu_custom_call.1} parent=1 // loop_pre_header
      _
    $region3: #{tpu_custom_call.1} parent=1 // loop_header
      %s14 = sphi 0, %s18
      %p15 = scmp.ge.s32.totalorder %s14, 6
      %s21 = sphi 0, %s33
      %s22 = sphi 0, %s29
      %s23 = sphi 0, %s21
      %s24 = sphi 0, %s22
      %s25 = sphi 0, %s23
      %s26 = sphi 0, %s24
      %s38 = sphi 0, %s40
      %s41 = sphi 0, %s38
      %s42 = sphi 0, %s41
      %s58 = sphi 0, %s42
      %s62 = sphi 0, %s62
      %s64 = sphi 0, %s62
      %s65 = sphi 0, %s64
      %s79 = sphi 0, %s65
      %s83 = sphi 0, %s83
      %s85 = sphi 0, %s83
      %s86 = sphi 0, %s85
      %s100 = sphi 0, %s86
      %s104 = sphi 0, %s104
      %s106 = sphi 0, %s104
      %s107 = sphi 0, %s106
      %s121 = sphi 0, %s107
      %s125 = sphi 0, %s125
      %s127 = sphi 0, %s125
      %s128 = sphi 0, %s127
      %s142 = sphi 0, %s128
      %s150 = sphi 0, %s152
      %s153 = sphi 0, %s150
      %s154 = sphi 0, %s153
      %s170 = sphi 0, %s154
    $region4: #{tpu_custom_call.1} parent=1 // loop_header_branch
      %17 = sbr.rel (%p15) target = $region8
    $region5: #{tpu_custom_call.1} parent=1 // loop_body
      %s19 = ssub.s32 %s14, 1
      %s20 = ssub.s32 %s14, 2
      %s27 = sadd.s32 1, %s22
      %p28 = scmp.ge.s32.totalorder %s27, 2
      %s29 = scalar_select %p28, 0, %s27
      %s30 = sadd.s32 1, %s21
      %s31 = scalar_select %p28, %s30, %s21
      %p32 = scmp.ge.s32.totalorder %s31, 2
      %s33 = scalar_select %p32, 0, %s31
      %s34 = ssub.s32 %s21, %s33
      %s35 = ssub.s32 %s22, %s29
      %s36 = sor.u32 %s34, %s35
      %p37 = scmp.eq.s32.totalorder %s36, 0
      %s39 = sadd.s32 %s38, 1
      %s40 = scalar_select %p37, %s38, %s39
      %p43 = pneg %p37
      %p44 = scmp.eq.s32.totalorder %s14, 3
      %p45 = por %p43, %p44
      %p46 = scmp.ne.s32.totalorder %s38, %s41
      %p47 = scmp.eq.s32.totalorder %s14, 0
      %p48 = por %p46, %p47
      %p49 = scmp.ne.s32.totalorder %s38, %s41
      %p50 = scmp.eq.s32.totalorder %s19, 3
      %p51 = por %p49, %p50
      %p52 = scmp.ne.s32.totalorder %s41, %s42
      %p53 = scmp.eq.s32.totalorder %s19, 0
      %p54 = por %p52, %p53
      %p55 = scmp.ne.s32.totalorder %s41, %s42
      %p56 = scmp.eq.s32.totalorder %s20, 3
      %p57 = por %p55, %p56
      %p59 = scmp.ne.s32.totalorder %s42, %s58
      %p60 = scmp.eq.s32.totalorder %s20, 0
      %p61 = por %p59, %p60
      %s63 = sadd.s32 %s62, 1
      %p66 = scmp.eq.s32.totalorder %s14, 3
      %p67 = scmp.ne.s32.totalorder %s62, %s64
      %p68 = scmp.eq.s32.totalorder %s14, 0
      %p69 = por %p67, %p68
      %p70 = scmp.ne.s32.totalorder %s62, %s64
      %p71 = scmp.eq.s32.totalorder %s19, 3
      %p72 = por %p70, %p71
      %p73 = scmp.ne.s32.totalorder %s64, %s65
      %p74 = scmp.eq.s32.totalorder %s19, 0
      %p75 = por %p73, %p74
      %p76 = scmp.ne.s32.totalorder %s64, %s65
      %p77 = scmp.eq.s32.totalorder %s20, 3
      %p78 = por %p76, %p77
      %p80 = scmp.ne.s32.totalorder %s65, %s79
      %p81 = scmp.eq.s32.totalorder %s20, 0
      %p82 = por %p80, %p81
      %s84 = sadd.s32 %s83, 1
      %p87 = scmp.eq.s32.totalorder %s14, 3
      %p88 = scmp.ne.s32.totalorder %s83, %s85
      %p89 = scmp.eq.s32.totalorder %s14, 0
      %p90 = por %p88, %p89
      %p91 = scmp.ne.s32.totalorder %s83, %s85
      %p92 = scmp.eq.s32.totalorder %s19, 3
      %p93 = por %p91, %p92
      %p94 = scmp.ne.s32.totalorder %s85, %s86
      %p95 = scmp.eq.s32.totalorder %s19, 0
      %p96 = por %p94, %p95
      %p97 = scmp.ne.s32.totalorder %s85, %s86
      %p98 = scmp.eq.s32.totalorder %s20, 3
      %p99 = por %p97, %p98
      %p101 = scmp.ne.s32.totalorder %s86, %s100
      %p102 = scmp.eq.s32.totalorder %s20, 0
      %p103 = por %p101, %p102
      %s105 = sadd.s32 %s104, 1
      %p108 = scmp.eq.s32.totalorder %s14, 3
      %p109 = scmp.ne.s32.totalorder %s104, %s106
      %p110 = scmp.eq.s32.totalorder %s14, 0
      %p111 = por %p109, %p110
      %p112 = scmp.ne.s32.totalorder %s104, %s106
      %p113 = scmp.eq.s32.totalorder %s19, 3
      %p114 = por %p112, %p113
      %p115 = scmp.ne.s32.totalorder %s106, %s107
      %p116 = scmp.eq.s32.totalorder %s19, 0
      %p117 = por %p115, %p116
      %p118 = scmp.ne.s32.totalorder %s106, %s107
      %p119 = scmp.eq.s32.totalorder %s20, 3
      %p120 = por %p118, %p119
      %p122 = scmp.ne.s32.totalorder %s107, %s121
      %p123 = scmp.eq.s32.totalorder %s20, 0
      %p124 = por %p122, %p123
      %s126 = sadd.s32 %s125, 1
      %p129 = scmp.eq.s32.totalorder %s14, 3
      %p130 = scmp.ne.s32.totalorder %s125, %s127
      %p131 = scmp.eq.s32.totalorder %s14, 0
      %p132 = por %p130, %p131
      %p133 = scmp.ne.s32.totalorder %s125, %s127
      %p134 = scmp.eq.s32.totalorder %s19, 3
      %p135 = por %p133, %p134
      %p136 = scmp.ne.s32.totalorder %s127, %s128
      %p137 = scmp.eq.s32.totalorder %s19, 0
      %p138 = por %p136, %p137
      %p139 = scmp.ne.s32.totalorder %s127, %s128
      %p140 = scmp.eq.s32.totalorder %s20, 3
      %p141 = por %p139, %p140
      %p143 = scmp.ne.s32.totalorder %s128, %s142
      %p144 = scmp.eq.s32.totalorder %s20, 0
      %p145 = por %p143, %p144
      %s146 = ssub.s32 %s21, %s33
      %s147 = ssub.s32 %s22, %s29
      %s148 = sor.u32 %s146, %s147
      %p149 = scmp.eq.s32.totalorder %s148, 0
      %s151 = sadd.s32 %s150, 1
      %s152 = scalar_select %p149, %s150, %s151
      %p155 = pneg %p149
      %p156 = scmp.eq.s32.totalorder %s14, 3
      %p157 = por %p155, %p156
      %p158 = scmp.ne.s32.totalorder %s150, %s153
      %p159 = scmp.eq.s32.totalorder %s14, 0
      %p160 = por %p158, %p159
      %p161 = scmp.ne.s32.totalorder %s150, %s153
      %p162 = scmp.eq.s32.totalorder %s19, 3
      %p163 = por %p161, %p162
      %p164 = scmp.ne.s32.totalorder %s153, %s154
      %p165 = scmp.eq.s32.totalorder %s19, 0
      %p166 = por %p164, %p165
      %p167 = scmp.ne.s32.totalorder %s153, %s154
      %p168 = scmp.eq.s32.totalorder %s20, 3
      %p169 = por %p167, %p168
      %p171 = scmp.ne.s32.totalorder %s154, %s170
      %p172 = scmp.eq.s32.totalorder %s20, 0
      %p173 = por %p171, %p172
      %p174 = scmp.le.s32.totalorder 1, %s14
      %p175 = scmp.lt.s32.totalorder %s14, 5
      %p176 = pnand %p174, %p175
      %p177 = pneg %p176
      // Predicated region
      $region9: #{tpu_custom_call.1} parent=5 // pred_check
        _
      $region10: #{tpu_custom_call.1} parent=5 // pred_check_branch
        %179 = sbr.rel (%p176) target = $region12
      $region11: #{tpu_custom_call.1} parent=5 // pred_region
        %s180 = ssub.s32 %s14, 1
        // Predicated region
        $region13: #{tpu_custom_call.1} parent=11 // pred_check
          %p181 = pneg %p75
        $region14: #{tpu_custom_call.1} parent=11 // pred_check_branch
          %183 = sbr.rel (%p181) target = $region16
        $region15: #{tpu_custom_call.1} parent=11 // pred_region
          _
        $region16: #{tpu_custom_call.1} parent=11 // pred_fallthru
          _
        // Predicated region
        $region17: #{tpu_custom_call.1} parent=11 // pred_check
          %p184 = pneg %p96
        $region18: #{tpu_custom_call.1} parent=11 // pred_check_branch
          %186 = sbr.rel (%p184) target = $region20
        $region19: #{tpu_custom_call.1} parent=11 // pred_region
          _
        $region20: #{tpu_custom_call.1} parent=11 // pred_fallthru
          _
        // Predicated region
        $region21: #{tpu_custom_call.1} parent=11 // pred_check
          %p187 = pneg %p117
        $region22: #{tpu_custom_call.1} parent=11 // pred_check_branch
          %189 = sbr.rel (%p187) target = $region24
        $region23: #{tpu_custom_call.1} parent=11 // pred_region
          _
        $region24: #{tpu_custom_call.1} parent=11 // pred_fallthru
          _
        // Predicated region
        $region25: #{tpu_custom_call.1} parent=11 // pred_check
          %p190 = pneg %p138
        $region26: #{tpu_custom_call.1} parent=11 // pred_check_branch
          %192 = sbr.rel (%p190) target = $region28
        $region27: #{tpu_custom_call.1} parent=11 // pred_region
          _
        $region28: #{tpu_custom_call.1} parent=11 // pred_fallthru
          _
      $region12: #{tpu_custom_call.1} parent=5 // pred_fallthru
        _
      %p193 = scmp.lt.s32.totalorder %s14, 4
      // Predicated region
      $region29: #{tpu_custom_call.1} parent=5 // pred_check
        %p194 = pneg %p193
      $region30: #{tpu_custom_call.1} parent=5 // pred_check_branch
        %196 = sbr.rel (%p194) target = $region32
      $region31: #{tpu_custom_call.1} parent=5 // pred_region
        // Predicated region
        $region33: #{tpu_custom_call.1} parent=31 // pred_check
          %p197 = pneg %p48
        $region34: #{tpu_custom_call.1} parent=31 // pred_check_branch
          %199 = sbr.rel (%p197) target = $region36
        $region35: #{tpu_custom_call.1} parent=31 // pred_region
          %s200 = smul.u32 2, %s22
          %p201 = scmp.lt.s32.totalorder %s21, 1
          %s202 = scalar_select %p201, %s21, 1
          %p203 = scmp.lt.s32.totalorder %s200, 3
          %s204 = scalar_select %p203, %s200, 3
          %s205 = smul.addr %s202, 4
          %s206 = sadd.s32 %s204, %s205
          %s207 = smul.addr %s206, 8
          %s208 = scalar_lea.vmem %s0, %s207
          %s209 = smul.u32 2, %s22
        $region36: #{tpu_custom_call.1} parent=31 // pred_fallthru
          _
      $region32: #{tpu_custom_call.1} parent=5 // pred_fallthru
        _
      %p210 = scmp.le.s32.totalorder 1, %s14
      %p211 = scmp.lt.s32.totalorder %s14, 5
      %p212 = pnand %p210, %p211
      %p213 = pneg %p212
      // Predicated region
      $region37: #{tpu_custom_call.1} parent=5 // pred_check
        _
      $region38: #{tpu_custom_call.1} parent=5 // pred_check_branch
        %215 = sbr.rel (%p212) target = $region40
      $region39: #{tpu_custom_call.1} parent=5 // pred_region
        %s216 = ssub.s32 %s14, 1
        %s217 = smul.u32 2, %s24
        %p218 = scmp.lt.s32.totalorder %s23, 1
        %s219 = scalar_select %p218, %s23, 1
        %p220 = scmp.lt.s32.totalorder %s217, 3
        %s221 = scalar_select %p220, %s217, 3
        %s222 = smul.addr %s219, 4
        %s223 = sadd.s32 %s221, %s222
        %s224 = smul.addr %s223, 8
        %s225 = scalar_lea.vmem %s0, %s224
        %p226 = pneg %p54
        %p227 = pneg %p51
        %p228 = pneg %p75
        %p229 = pneg %p72
        %p230 = pneg %p96
        %p231 = pneg %p93
        %p232 = pneg %p117
        %p233 = pneg %p114
        %p234 = pneg %p138
        %p235 = pneg %p135
        %p236 = pneg %p166
        %p237 = pneg %p163
        %s238 = sand.u32 %s153, 1
        %s239 = scalar_lea.sflag [#allocation3], %s238
        %s240 = sand.u32 %s153, 1
        %s241 = smul.addr %s240, 16
        %s242 = scalar_lea.vmem [#allocation2], %s241
        %s243 = smul.u32 2, %s24
        %p244 = scmp.lt.s32.totalorder %s23, 1
        %s245 = scalar_select %p244, %s23, 1
        %p246 = scmp.lt.s32.totalorder %s243, 3
        %s247 = scalar_select %p246, %s243, 3
        %s248 = smul.addr %s245, 4
        %s249 = sadd.s32 %s247, %s248
        %s250 = smul.addr %s249, 8
        %s251 = scalar_lea.vmem %s0, %s250
        %s252 = smul.u32 2, %s24
        %s253 = smul.u32 2, %s24
        %v254 = vld [vmem:[%s251] sm:$0xff]
        %v255 = vld [vmem:[%s251 + $0x8] sm:$0xff]
        %v256 = vld [vmem:[%s1] sm:$0xff]
        %v257 = vld [vmem:[%s1 + $0x8] sm:$0xff]
        %v258 = vld [vmem:[%s1 + $0x10] sm:$0xff]
        %v259 = vld [vmem:[%s1 + $0x18] sm:$0xff]
        %v260 = vld [vmem:[%s2] sm:$0xff]
        %v261 = vld [vmem:[%s2 + $0x8] sm:$0xff]
        %v262 = vld [vmem:[%s2 + $0x10] sm:$0xff]
        %v263 = vld [vmem:[%s2 + $0x18] sm:$0xff]
        %265 = vset.pattern.permute.xlu0 0
        %266 = vperm.xlu0 %265, %v260
        %v267 = vpop.permute.xlu0 %266
        %270 = vset.pattern.permute.xlu0 0
        %271 = vperm.xlu0 %270, %v261
        %v272 = vpop.permute.xlu0 %271
        %275 = vset.pattern.permute.xlu0 0
        %276 = vperm.xlu0 %275, %v262
        %v277 = vpop.permute.xlu0 %276
        %280 = vset.pattern.permute.xlu0 0
        %281 = vperm.xlu0 %280, %v263
        %v282 = vpop.permute.xlu0 %281
        %vm284 = vcmask 64512
        %v286 = vsel %vm284, %v256, 0
        %v289 = vsel %vm284, %v257, 0
        %v292 = vsel %vm284, %v258, 0
        %v295 = vsel %vm284, %v259, 0
        %297 = vmatprep.subr.mxu0 %v255
        %298 = vmatpush1.msra.mxu0 %v254
        %299 = vmatprep.subr.mxu0 0.0
        %300 = vmatpush1.msra.mxu0 0.0
        %301 = vmatprep.subr.mxu0 0.0
        %302 = vmatpush1.msra.mxu0 0.0
        %303 = vmatprep.subr.mxu0 0.0
        %304 = vmatpush1.msra.mxu0 0.0
        %305 = vmatprep.subr.mxu0 0.0
        %306 = vmatpush1.msra.mxu0 0.0
        %307 = vmatprep.subr.mxu0 0.0
        %308 = vmatpush1.msra.mxu0 0.0
        %309 = vmatprep.subr.mxu0 0.0
        %310 = vmatpush1.msra.mxu0 0.0
        %311 = vmatprep.subr.mxu0 0.0
        %312 = vmatpush1.msra.mxu0 0.0
        %313 = vmatprep.subr.mxu0 0.0
        %314 = vmatpush1.msra.mxu0 0.0
        %315 = vmatprep.subr.mxu0 0.0
        %316 = vmatpush1.msra.mxu0 0.0
        %317 = vmatprep.subr.mxu0 0.0
        %318 = vmatpush1.msra.mxu0 0.0
        %319 = vmatprep.subr.mxu0 0.0
        %320 = vmatpush1.msra.mxu0 0.0
        %321 = vmatprep.subr.mxu0 0.0
        %322 = vmatpush1.msra.mxu0 0.0
        %323 = vmatprep.subr.mxu0 0.0
        %324 = vmatpush1.msra.mxu0 0.0
        %325 = vmatprep.subr.mxu0 0.0
        %326 = vmatpush1.msra.mxu0 0.0
        %327 = vmatprep.subr.mxu0 0.0
        %328 = vmatpush1.msra.mxu0 0.0
        %329 = vmatprep.subr.mxu0 0.0
        %330 = vmatpush1.msra.mxu0 0.0
        %331 = vmatprep.subr.mxu0 0.0
        %332 = vmatpush1.msra.mxu0 0.0
        %333 = vmatprep.subr.mxu0 0.0
        %334 = vmatpush1.msra.mxu0 0.0
        %335 = vmatprep.subr.mxu0 0.0
        %336 = vmatpush1.msra.mxu0 0.0
        %337 = vmatprep.subr.mxu0 0.0
        %338 = vmatpush1.msra.mxu0 0.0
        %339 = vmatprep.subr.mxu0 0.0
        %340 = vmatpush1.msra.mxu0 0.0
        %341 = vmatprep.subr.mxu0 0.0
        %342 = vmatpush1.msra.mxu0 0.0
        %343 = vmatprep.subr.mxu0 0.0
        %344 = vmatpush1.msra.mxu0 0.0
        %345 = vmatprep.subr.mxu0 0.0
        %346 = vmatpush1.msra.mxu0 0.0
        %347 = vmatprep.subr.mxu0 0.0
        %348 = vmatpush1.msra.mxu0 0.0
        %349 = vmatprep.subr.mxu0 0.0
        %350 = vmatpush1.msra.mxu0 0.0
        %351 = vmatprep.subr.mxu0 0.0
        %352 = vmatpush1.msra.mxu0 0.0
        %353 = vmatprep.subr.mxu0 0.0
        %354 = vmatpush1.msra.mxu0 0.0
        %355 = vmatprep.subr.mxu0 0.0
        %356 = vmatpush1.msra.mxu0 0.0
        %357 = vmatprep.subr.mxu0 0.0
        %358 = vmatpush1.msra.mxu0 0.0
        %359 = vmatprep.subr.mxu0 0.0
        %360 = vmatpush1.msra.mxu0 0.0
        %361 = vmatprep.mubr.f32.mxu0 0.0
        %362 = vmatmul.mubr.f32.gmra.mrb[0].mxu0 %v286
        %v363 = vpop.f32.mrb[0].mxu0
        %v364 = vadd.f32 %v267, %v363
        %v365 = vpop.f32.mrb[0].mxu0
        %v366 = vadd.f32 %v267, %v365
        %367 = vmatprep.mubr.f32.mxu0 0.0
        %368 = vmatmul.mubr.f32.gmra.mrb[0].mxu0 %v289
        %v369 = vpop.f32.mrb[0].mxu0
        %v370 = vadd.f32 %v272, %v369
        %v371 = vpop.f32.mrb[0].mxu0
        %v372 = vadd.f32 %v272, %v371
        %373 = vmatprep.mubr.f32.mxu0 0.0
        %374 = vmatmul.mubr.f32.gmra.mrb[0].mxu0 %v292
        %v375 = vpop.f32.mrb[0].mxu0
        %v376 = vadd.f32 %v277, %v375
        %v377 = vpop.f32.mrb[0].mxu0
        %v378 = vadd.f32 %v277, %v377
        %379 = vmatprep.mubr.f32.mxu0 0.0
        %380 = vmatmul.mubr.f32.gmra.mrb[0].mxu0 %v295
        %v381 = vpop.f32.mrb[0].mxu0
        %v382 = vadd.f32 %v282, %v381
        %v383 = vpop.f32.mrb[0].mxu0
        %v384 = vadd.f32 %v282, %v383
        %385 = vdwg.mxu0
        %v386 = vmul.f32 %v364, 0.5
        %v387 = vmul.f32 %v366, 0.5
        %v388 = vmul.f32 %v370, 0.5
        %v389 = vmul.f32 %v372, 0.5
        %v390 = vmul.f32 %v376, 0.5
        %v391 = vmul.f32 %v378, 0.5
        %v392 = vmul.f32 %v382, 0.5
        %v393 = vmul.f32 %v384, 0.5
        %v394 = vmul.f32 %v364, 0.70710677
        %v395 = vmul.f32 %v366, 0.70710677
        %v396 = vmul.f32 %v370, 0.70710677
        %v397 = vmul.f32 %v372, 0.70710677
        %v398 = vmul.f32 %v376, 0.70710677
        %v399 = vmul.f32 %v378, 0.70710677
        %v400 = vmul.f32 %v382, 0.70710677
        %v401 = vmul.f32 %v384, 0.70710677
        %v402 = verf.f32.pop %v394
        %v403 = verf.f32.pop %v395
        %v404 = verf.f32.pop %v396
        %v405 = verf.f32.pop %v397
        %v406 = verf.f32.pop %v398
        %v407 = verf.f32.pop %v399
        %v408 = verf.f32.pop %v400
        %v409 = verf.f32.pop %v401
        %v410 = vadd.f32 %v402, 1.0
        %v411 = vadd.f32 %v403, 1.0
        %v412 = vadd.f32 %v404, 1.0
        %v413 = vadd.f32 %v405, 1.0
        %v414 = vadd.f32 %v406, 1.0
        %v415 = vadd.f32 %v407, 1.0
        %v416 = vadd.f32 %v408, 1.0
        %v417 = vadd.f32 %v409, 1.0
        %v418 = vmul.f32 %v386, %v410
        %v419 = vmul.f32 %v387, %v411
        %v420 = vmul.f32 %v388, %v412
        %v421 = vmul.f32 %v389, %v413
        %v422 = vmul.f32 %v390, %v414
        %v423 = vmul.f32 %v391, %v415
        %v424 = vmul.f32 %v392, %v416
        %v425 = vmul.f32 %v393, %v417
        %v426 = vld [vmem:[%s3] sm:$0xff]
        %v427 = vld [vmem:[%s4] sm:$0xff]
        %429 = vset.pattern.permute.xlu0 0
        %430 = vperm.xlu0 %429, %v427
        %v431 = vpop.permute.xlu0 %430
        %vm433 = vcmask 261120
        %v435 = vsel %vm433, %v426, 0
        %437 = vmatprep.subr.mxu0 %v419
        %438 = vmatpush1.msra.mxu0 %v418
        %439 = vmatprep.subr.mxu0 %v421
        %440 = vmatpush1.msra.mxu0 %v420
        %441 = vmatprep.subr.mxu0 %v423
        %442 = vmatpush1.msra.mxu0 %v422
        %443 = vmatprep.subr.mxu0 %v425
        %444 = vmatpush1.msra.mxu0 %v424
        %445 = vmatprep.subr.mxu0 0.0
        %446 = vmatpush1.msra.mxu0 0.0
        %447 = vmatprep.subr.mxu0 0.0
        %448 = vmatpush1.msra.mxu0 0.0
        %449 = vmatprep.subr.mxu0 0.0
        %450 = vmatpush1.msra.mxu0 0.0
        %451 = vmatprep.subr.mxu0 0.0
        %452 = vmatpush1.msra.mxu0 0.0
        %453 = vmatprep.subr.mxu0 0.0
        %454 = vmatpush1.msra.mxu0 0.0
        %455 = vmatprep.subr.mxu0 0.0
        %456 = vmatpush1.msra.mxu0 0.0
        %457 = vmatprep.subr.mxu0 0.0
        %458 = vmatpush1.msra.mxu0 0.0
        %459 = vmatprep.subr.mxu0 0.0
        %460 = vmatpush1.msra.mxu0 0.0
        %461 = vmatprep.subr.mxu0 0.0
        %462 = vmatpush1.msra.mxu0 0.0
        %463 = vmatprep.subr.mxu0 0.0
        %464 = vmatpush1.msra.mxu0 0.0
        %465 = vmatprep.subr.mxu0 0.0
        %466 = vmatpush1.msra.mxu0 0.0
        %467 = vmatprep.subr.mxu0 0.0
        %468 = vmatpush1.msra.mxu0 0.0
        %469 = vmatprep.subr.mxu0 0.0
        %470 = vmatpush1.msra.mxu0 0.0
        %471 = vmatprep.subr.mxu0 0.0
        %472 = vmatpush1.msra.mxu0 0.0
        %473 = vmatprep.subr.mxu0 0.0
        %474 = vmatpush1.msra.mxu0 0.0
        %475 = vmatprep.subr.mxu0 0.0
        %476 = vmatpush1.msra.mxu0 0.0
        %477 = vmatprep.subr.mxu0 0.0
        %478 = vmatpush1.msra.mxu0 0.0
        %479 = vmatprep.subr.mxu0 0.0
        %480 = vmatpush1.msra.mxu0 0.0
        %481 = vmatprep.subr.mxu0 0.0
        %482 = vmatpush1.msra.mxu0 0.0
        %483 = vmatprep.subr.mxu0 0.0
        %484 = vmatpush1.msra.mxu0 0.0
        %485 = vmatprep.subr.mxu0 0.0
        %486 = vmatpush1.msra.mxu0 0.0
        %487 = vmatprep.subr.mxu0 0.0
        %488 = vmatpush1.msra.mxu0 0.0
        %489 = vmatprep.subr.mxu0 0.0
        %490 = vmatpush1.msra.mxu0 0.0
        %491 = vmatprep.subr.mxu0 0.0
        %492 = vmatpush1.msra.mxu0 0.0
        %493 = vmatprep.subr.mxu0 0.0
        %494 = vmatpush1.msra.mxu0 0.0
        %495 = vmatprep.subr.mxu0 0.0
        %496 = vmatpush1.msra.mxu0 0.0
        %497 = vmatprep.subr.mxu0 0.0
        %498 = vmatpush1.msra.mxu0 0.0
        %499 = vmatprep.subr.mxu0 0.0
        %500 = vmatpush1.msra.mxu0 0.0
        %501 = vmatprep.mubr.f32.mxu0 0.0
        %502 = vmatmul.mubr.f32.gmra.mrb[0].mxu0 %v435
        %v503 = vpop.f32.mrb[0].mxu0
        %v504 = vadd.f32 %v431, %v503
        %v505 = vpop.f32.mrb[0].mxu0
        %v506 = vadd.f32 %v431, %v505
        %507 = vdwg.mxu0
        %508 = vst [vmem:[%s242] sm:$0xff] %v504
        %509 = vst [vmem:[%s242 + $0x8] sm:$0xff] %v506
        %s510 = sand.u32 %s153, 1
        %s511 = scalar_lea.sflag [#allocation3], %s510
        %s512 = sand.u32 %s153, 1
        %s513 = smul.addr %s512, 16
        %s514 = scalar_lea.vmem [#allocation2], %s513
        // Predicated region
        $region41: #{tpu_custom_call.1} parent=39 // pred_check
          %p515 = pneg %p163
        $region42: #{tpu_custom_call.1} parent=39 // pred_check_branch
          %517 = sbr.rel (%p515) target = $region44
        $region43: #{tpu_custom_call.1} parent=39 // pred_region
          %s518 = smul.u32 2, %s24
          %s520 = ssub.s32 256, 256
          %521 = vsyncadd %s511, %s520
          %s522 = smul.addr %s23, 4
          %s523 = sadd.s32 %s518, %s522
          %s524 = smul.addr %s523, 128
          %s525 = scalar_lea.hbm %s5, %s524
          %s527 = sshll.u32 %s514, 4
          %s528 = int_to_ptr.vmem [resolvable:$true] %s527
          %530 = dma.vmem_to_hbm [thread:$0]  %s528, 256, %s525, %s511
        $region44: #{tpu_custom_call.1} parent=39 // pred_fallthru
          _
      $region40: #{tpu_custom_call.1} parent=5 // pred_fallthru
        _
      %p531 = scmp.le.s32.totalorder 2, %s14
      // Predicated region
      $region45: #{tpu_custom_call.1} parent=5 // pred_check
        %p532 = pneg %p531
      $region46: #{tpu_custom_call.1} parent=5 // pred_check_branch
        %534 = sbr.rel (%p532) target = $region48
      $region47: #{tpu_custom_call.1} parent=5 // pred_region
        %s535 = ssub.s32 %s14, 2
        // Predicated region
        $region49: #{tpu_custom_call.1} parent=47 // pred_check
          %p536 = pneg %p169
        $region50: #{tpu_custom_call.1} parent=47 // pred_check_branch
          %538 = sbr.rel (%p536) target = $region52
        $region51: #{tpu_custom_call.1} parent=47 // pred_region
          %s539 = sand.u32 %s154, 1
          %s540 = scalar_lea.sflag [#allocation3], %s539
          %s541 = sand.u32 %s154, 1
          %s542 = smul.addr %s541, 16
          %s543 = scalar_lea.vmem [#allocation2], %s542
          %544 = dma.done %s540, 256
        $region52: #{tpu_custom_call.1} parent=47 // pred_fallthru
          _
      $region48: #{tpu_custom_call.1} parent=5 // pred_fallthru
        _
    $region6: #{tpu_custom_call.1} parent=1 // loop_footer
      %s18 = sadd.s32 1, %s14
    $region7: #{tpu_custom_call.1} parent=1 // loop_footer_branch
      %13 = sbr.rel target = $region3
    $region8: #{tpu_custom_call.1} parent=1 // loop_exit
      _
    %545 = vsyncpa [#allocation3], 1
    %s546 = scalar_lea.sflag [#allocation3], 1
    %547 = vsyncpa %s546, 1

</llo_original>
